<compile_context>
chip_gen: v5e
topology: v5e:2x2
jax: 0.10.0
libtpu: 0.0.40
codegen_flags: <defaults>
</compile_context>

<pallas_src>
import jax
import jax.numpy as jnp
from jax.experimental import pallas as pl
from jax.experimental.pallas import tpu as pltpu

LANE = 128  # TPU lane width (last dim); also used to pad the node dim


def _round_up(x, m):
    return ((x + m - 1) // m) * m


def _pad2d(x, rows, cols):
    r, c = x.shape
    return jnp.pad(x, ((0, rows - r), (0, cols - c)))


# ----------------------------- Pallas kernel --------------------------------
def _make_fused_gnn_kernel(hid_p, ncls_p):
    """Kernel factory closing over the (static) padded feature widths."""

    def kernel(a_ref, x_ref, w_ref, b_ref, o_ref):
        # A_hat promoted to f32 once: aggregation runs bf16-valued A in f32 passes,
        # so the f32 matmul accumulators are never double-rounded through bf16.
        a = a_ref[...].astype(jnp.float32)

        # ----- layer 1: relu(A_hat @ (X @ W1) + b1) -----
        xw = jnp.dot(x_ref[...], w_ref[:, :hid_p],
                     preferred_element_type=jnp.float32)          # bf16 x bf16 -> f32
        agg1 = jnp.dot(a, xw, preferred_element_type=jnp.float32)  # f32 aggregation
        h = jnp.maximum(agg1 + b_ref[0:1, :], 0.0)                 # f32 epilogue (v5e-safe)
        # Dropout(p=0.5): identity in eval/inference mode.
        # TODO(synk): training-mode stochastic dropout (pltpu.prng_*) not implemented.

        # ----- layer 2: A_hat @ (h @ W2) + b2 -----
        hw = jnp.dot(h.astype(jnp.bfloat16), w_ref[:, hid_p:hid_p + ncls_p],
                     preferred_element_type=jnp.float32)           # bf16 MXU input
        agg2 = jnp.dot(a, hw, preferred_element_type=jnp.float32)
        o_ref[...] = (agg2 + b_ref[1:2, :]).astype(o_ref.dtype)

    return kernel


# ------------------------------- glue (JAX) ----------------------------------
def normalized_adjacency(edge_index, num_nodes):
    """Dense D^-1/2 (A + I) D^-1/2 from a [2, E] edge_index (src, dst)."""
    src, dst = edge_index[0], edge_index[1]
    a = jnp.zeros((num_nodes, num_nodes), jnp.float32)
    a = a.at[dst, src].add(1.0)                       # scatter-ADD (duplicate edges sum)
    diag = jnp.diagonal(a)
    a = a + jnp.diag(jnp.where(diag == 0.0, 1.0, 0.0))  # add only missing self loops
    deg = jnp.sum(a, axis=1)
    d_inv_sqrt = jnp.where(deg > 0.0,
                           1.0 / jnp.sqrt(jnp.where(deg > 0.0, deg, 1.0)), 0.0)
    return d_inv_sqrt[:, None] * a * d_inv_sqrt[None, :]


def prepare_gnn_inputs(x, edge_index, params):
    """One-time preprocessing for a static graph.

    x: [B, N, F_in] batch of feature sets on the same graph.
    Builds + caches A_hat (bf16), pads node & feature dims to 128, packs W1|W2 and
    b1|b2 each into a single operand (fewer per-call DMAs).
    """
    b, n, f_in = x.shape
    hid = params["w1"].shape[1]
    ncls = params["w2"].shape[1]

    n_p = _round_up(n, LANE)       # lane-dense A_hat, full MXU K for aggregation
    f_in_p = _round_up(f_in, LANE)
    hid_p = _round_up(hid, LANE)
    ncls_p = _round_up(ncls, LANE)
    # Packing assumptions (hold for any widths <= 128; relax by padding to max).
    assert f_in_p == hid_p, "packed W1|W2 assumes equal padded fan-in"
    assert hid_p == ncls_p, "packed b1|b2 assumes equal padded width"

    a_hat = normalized_adjacency(edge_index, n)                   # built ONCE, cached
    a_hat_p = _pad2d(a_hat, n_p, n_p).astype(jnp.bfloat16)
    x_p = jnp.pad(x, ((0, 0), (0, n_p - n), (0, f_in_p - f_in))).astype(jnp.bfloat16)

    w_packed = jnp.concatenate(
        [_pad2d(params["w1"], f_in_p, hid_p),
         _pad2d(params["w2"], hid_p, ncls_p)], axis=1).astype(jnp.bfloat16)
    b_packed = jnp.concatenate(
        [_pad2d(params["b1"], 1, hid_p),
         _pad2d(params["b2"], 1, ncls_p)], axis=0).astype(jnp.float32)

    dims = {"n_p": n_p, "f_in_p": f_in_p, "hid_p": hid_p, "ncls_p": ncls_p}
    return a_hat_p, x_p, w_packed, b_packed, dims


def simple_gnn_forward(a_hat_p, x_p, w_packed, b_packed, dims, num_nodes, num_classes):
    """Matches SimpleGNN.forward (eval mode); one fused pallas_call over the batch."""
    bsz, n_p, f_in_p = x_p.shape
    hid_p, ncls_p = dims["hid_p"], dims["ncls_p"]

    out_p = pl.pallas_call(
        _make_fused_gnn_kernel(hid_p, ncls_p),
        out_shape=jax.ShapeDtypeStruct((bsz, n_p, ncls_p), jnp.float32),
        grid=(bsz,),
        in_specs=[
            # Shared operands: constant block index -> resident across the batch loop.
            pl.BlockSpec((n_p, n_p), lambda b: (0, 0)),            # A_hat
            pl.BlockSpec((None, n_p, f_in_p), lambda b: (b, 0, 0)),  # X (batch squeezed)
            pl.BlockSpec(w_packed.shape, lambda b: (0, 0)),        # W1|W2 packed
            pl.BlockSpec(b_packed.shape, lambda b: (0, 0)),        # b1|b2 packed
        ],
        out_specs=pl.BlockSpec((None, n_p, ncls_p), lambda b: (b, 0, 0)),
        compiler_params=pltpu.CompilerParams(dimension_semantics=("parallel",)),
    )(a_hat_p, x_p, w_packed, b_packed)

    # Padded node rows (>= num_nodes) hold relu(b1)/garbage; harmless because A_hat's
    # padded columns are zero and we slice the logical result back out here.
    return out_p[:, :num_nodes, :num_classes]


# --------------------------------- main --------------------------------------
if __name__ == "__main__":
    batch = 2
    num_nodes = 16
    num_features = 8
    hidden_dim = 32
    num_classes = 2

    key = jax.random.PRNGKey(0)
    k_x, k_w1, k_w2 = jax.random.split(key, 3)

    # Batch of node-feature sets [B, N, F_in] on one static graph.
    x = jax.random.normal(k_x, (batch, num_nodes, num_features), dtype=jnp.float32)

    # Deterministic ring graph (both directions), no self loops.
    src = jnp.arange(num_nodes, dtype=jnp.int32)
    dst = (src + 1) % num_nodes
    edge_index = jnp.stack(
        [jnp.concatenate([src, dst]), jnp.concatenate([dst, src])], axis=0
    )  # [2, 2N]

    # Deterministic Glorot-style init (shapes from GCNConv(in, out)).
    def glorot(k, fan_in, fan_out):
        limit = jnp.sqrt(6.0 / (fan_in + fan_out))
        return jax.random.uniform(
            k, (fan_in, fan_out), jnp.float32, minval=-limit, maxval=limit
        )

    params = {
        "w1": glorot(k_w1, num_features, hidden_dim),
        "b1": jnp.zeros((1, hidden_dim), jnp.float32),
        "w2": glorot(k_w2, hidden_dim, num_classes),
        "b2": jnp.zeros((1, num_classes), jnp.float32),
    }

    # One-time graph/param preprocessing (A_hat cached here, NOT rebuilt per forward).
    a_hat_p, x_p, w_packed, b_packed, dims = prepare_gnn_inputs(x, edge_index, params)

    out = simple_gnn_forward(a_hat_p, x_p, w_packed, b_packed, dims,
                             num_nodes, num_classes)
    out = jax.block_until_ready(out)

    # Pure-JAX f32 reference of the module math (kernel uses bf16 MXU inputs with
    # f32 accumulation, so allow a small quantization tolerance).
    a_hat = normalized_adjacency(edge_index, num_nodes)
    h_ref = jnp.maximum(
        jnp.einsum("ij,bjk->bik", a_hat, x @ params["w1"]) + params["b1"], 0.0)
    ref = jnp.einsum("ij,bjk->bik", a_hat, h_ref @ params["w2"]) + params["b2"]

    assert out.shape == (batch, num_nodes, num_classes)
    assert jnp.allclose(out, ref, atol=5e-2, rtol=5e-2), (
        f"max abs err = {jnp.max(jnp.abs(out - ref))}"
    )

    print("KERNEL_OK")
</pallas_src>

<mosaic_0001>
module attributes {stable_mosaic.version = 11 : i64} {
  func.func @kernel(%arg0: i32, %arg1: memref<128x128xbf16, #tpu.memory_space<vmem>>, %arg2: memref<1x128x128xbf16, #tpu.memory_space<vmem>>, %arg3: memref<128x256xbf16, #tpu.memory_space<vmem>>, %arg4: memref<2x128xf32, #tpu.memory_space<vmem>>, %arg5: memref<1x128x128xf32, #tpu.memory_space<vmem>>) attributes {dimension_semantics = [#tpu.dimension_semantics<parallel>], iteration_bounds = array<i64: 2>, scalar_prefetch = 0 : i64, scratch_operands = 0 : i64, tpu.core_type = #tpu.core_type<tc>, window_params = [{pipeline_mode = #tpu.pipeline_mode<synchronous>, transform_indices = @transform_0, window_bounds = array<i64: 128, 128>}, {transform_indices = @transform_1, window_bounds = array<i64: 1, 128, 128>}, {pipeline_mode = #tpu.pipeline_mode<synchronous>, transform_indices = @transform_2, window_bounds = array<i64: 128, 256>}, {pipeline_mode = #tpu.pipeline_mode<synchronous>, transform_indices = @transform_3, window_bounds = array<i64: 2, 128>}, {transform_indices = @transform_4, window_bounds = array<i64: 1, 128, 128>}]} {
    %c0 = arith.constant 0 : index
    %c0_0 = arith.constant 0 : index
    %0 = vector.load %arg1[%c0, %c0_0] : memref<128x128xbf16, #tpu.memory_space<vmem>>, vector<128x128xbf16>
    %1 = arith.extf %0 : vector<128x128xbf16> to vector<128x128xf32>
    %c0_1 = arith.constant 0 : index
    %c0_2 = arith.constant 0 : index
    %c0_3 = arith.constant 0 : index
    %2 = vector.load %arg2[%c0_1, %c0_2, %c0_3] : memref<1x128x128xbf16, #tpu.memory_space<vmem>>, vector<1x128x128xbf16>
    %3 = vector.shape_cast %2 : vector<1x128x128xbf16> to vector<128x128xbf16>
    %c0_4 = arith.constant 0 : index
    %c0_5 = arith.constant 0 : index
    %4 = vector.load %arg3[%c0_4, %c0_5] : memref<128x256xbf16, #tpu.memory_space<vmem>>, vector<128x128xbf16>
    %cst = arith.constant dense<0.000000e+00> : vector<128x128xf32>
    %5 = tpu.matmul %3, %4, %cst {dimension_numbers = #tpu.dot_dimension_numbers<[1], [0], [0], [1], [0, 0, 1, 1], [], []>} : vector<128x128xbf16>, vector<128x128xbf16>, vector<128x128xf32> -> vector<128x128xf32>
    %cst_6 = arith.constant dense<0.000000e+00> : vector<128x128xf32>
    %6 = tpu.matmul %1, %5, %cst_6 {dimension_numbers = #tpu.dot_dimension_numbers<[1], [0], [0], [1], [0, 0, 1, 1], [], []>} : vector<128x128xf32>, vector<128x128xf32>, vector<128x128xf32> -> vector<128x128xf32>
    %c0_7 = arith.constant 0 : index
    %c0_8 = arith.constant 0 : index
    %7 = vector.load %arg4[%c0_7, %c0_8] : memref<2x128xf32, #tpu.memory_space<vmem>>, vector<1x128xf32>
    %8 = vector.broadcast %7 : vector<1x128xf32> to vector<128x128xf32>
    %9 = arith.addf %6, %8 : vector<128x128xf32>
    %cst_9 = arith.constant 0.000000e+00 : f32
    %10 = vector.broadcast %cst_9 : f32 to vector<128x128xf32>
    %11 = arith.maximumf %9, %10 : vector<128x128xf32>
    %12 = arith.truncf %11 : vector<128x128xf32> to vector<128x128xbf16>
    %c0_10 = arith.constant 0 : index
    %c128 = arith.constant 128 : index
    %13 = vector.load %arg3[%c0_10, %c128] : memref<128x256xbf16, #tpu.memory_space<vmem>>, vector<128x128xbf16>
    %cst_11 = arith.constant dense<0.000000e+00> : vector<128x128xf32>
    %14 = tpu.matmul %12, %13, %cst_11 {dimension_numbers = #tpu.dot_dimension_numbers<[1], [0], [0], [1], [0, 0, 1, 1], [], []>} : vector<128x128xbf16>, vector<128x128xbf16>, vector<128x128xf32> -> vector<128x128xf32>
    %cst_12 = arith.constant dense<0.000000e+00> : vector<128x128xf32>
    %15 = tpu.matmul %1, %14, %cst_12 {dimension_numbers = #tpu.dot_dimension_numbers<[1], [0], [0], [1], [0, 0, 1, 1], [], []>} : vector<128x128xf32>, vector<128x128xf32>, vector<128x128xf32> -> vector<128x128xf32>
    %c1 = arith.constant 1 : index
    %c0_13 = arith.constant 0 : index
    %16 = vector.load %arg4[%c1, %c0_13] : memref<2x128xf32, #tpu.memory_space<vmem>>, vector<1x128xf32>
    %17 = vector.broadcast %16 : vector<1x128xf32> to vector<128x128xf32>
    %18 = arith.addf %15, %17 : vector<128x128xf32>
    %c0_14 = arith.constant 0 : index
    %c0_15 = arith.constant 0 : index
    %c0_16 = arith.constant 0 : index
    %19 = vector.load %arg5[%c0_14, %c0_15, %c0_16] : memref<1x128x128xf32, #tpu.memory_space<vmem>>, vector<1x128x128xf32>
    %20 = vector.shape_cast %19 : vector<1x128x128xf32> to vector<128x128xf32>
    %21 = vector.shape_cast %18 : vector<128x128xf32> to vector<1x128x128xf32>
    tpu.vector_store %arg5[%c0_14, %c0_15, %c0_16], %21 {strides = array<i32>} : memref<1x128x128xf32, #tpu.memory_space<vmem>>, vector<1x128x128xf32>,
    return
  }
  func.func @transform_0(%arg0: i32) -> (i32, i32) {
    %c0_i32 = arith.constant 0 : i32
    %c0_i32_0 = arith.constant 0 : i32
    %c0_i32_1 = arith.constant 0 : i32
    return %c0_i32, %c0_i32_0 : i32, i32
  }
  func.func @transform_1(%arg0: i32) -> (i32, i32, i32) {
    %c0_i32 = arith.constant 0 : i32
    %c0_i32_0 = arith.constant 0 : i32
    %c0_i32_1 = arith.constant 0 : i32
    return %arg0, %c0_i32, %c0_i32_0 : i32, i32, i32
  }
  func.func @transform_2(%arg0: i32) -> (i32, i32) {
    %c0_i32 = arith.constant 0 : i32
    %c0_i32_0 = arith.constant 0 : i32
    %c0_i32_1 = arith.constant 0 : i32
    return %c0_i32, %c0_i32_0 : i32, i32
  }
  func.func @transform_3(%arg0: i32) -> (i32, i32) {
    %c0_i32 = arith.constant 0 : i32
    %c0_i32_0 = arith.constant 0 : i32
    %c0_i32_1 = arith.constant 0 : i32
    return %c0_i32, %c0_i32_0 : i32, i32
  }
  func.func @transform_4(%arg0: i32) -> (i32, i32, i32) {
    %c0_i32 = arith.constant 0 : i32
    %c0_i32_0 = arith.constant 0 : i32
    %c0_i32_1 = arith.constant 0 : i32
    return %arg0, %c0_i32, %c0_i32_0 : i32, i32, i32
  }
}

</mosaic_0001>

<llo_original>
// kernel: tpu_custom_call.1
$region0: #{tpu_custom_call.1}
  #allocation0 [shape = 'u32[]', space=smem, size = 0x4, offset = 0x4, fixed_abs, tag = 'smem constant byte address 0x4 - core index']
  #allocation1 [shape = 'u32[72,128]{1,0:T(1,128)}', space=vmem, size = 0x9000, scoped, tag = 'internal scratch']
  %s0 = inlined_call_operand.hbm [shape: bf16[128,128], index: 0, kind: input, shape index: {}]
  %s1 = inlined_call_operand.hbm [shape: bf16[2,128,128], index: 1, kind: input, shape index: {}]
  %s2 = inlined_call_operand.hbm [shape: bf16[128,256], index: 2, kind: input, shape index: {}]
  %s3 = inlined_call_operand.vmem [shape: f32[2,128], index: 3, kind: input, shape index: {}]
  %s4 = inlined_call_operand.hbm [shape: f32[2,128,128], index: 4, kind: output, shape index: {}]
  %s5 = sld [smem:[#allocation0]]
  $region61: #{tpu_custom_call.1} parent=0
    _
  %s7 = ssub.s32 1, %s5
  %s8 = scalar_select 0, %s7, %s5
  $region1: #{tpu_custom_call.1} parent=0
    #allocation2 [shape = 'u8[32768]{0}', space=vmem, size = 0x8000, scoped, tag = 'input window, operand 0, single buffered']
    #allocation3 [shape = 's32[2]{0}', space=sflag, size = 0x8, scoped, tag = 'scoped memory for tpu_custom_call.1']
    #allocation4 [shape = 's32[2]{0}', space=sflag, size = 0x8, scoped, tag = 'scoped memory for tpu_custom_call.1']
    #allocation5 [shape = 'u8[65536]{0}', space=vmem, size = 0x10000, scoped, tag = 'input window, operand 1']
    #allocation6 [shape = 's32[2]{0}', space=sflag, size = 0x8, scoped, tag = 'scoped memory for tpu_custom_call.1']
    #allocation7 [shape = 'u8[65536]{0}', space=vmem, size = 0x10000, scoped, tag = 'input window, operand 2, single buffered']
    #allocation8 [shape = 'u8[131072]{0}', space=vmem, size = 0x20000, scoped, tag = 'output window, operand 0']
    %9 = vsyncpa [#allocation3], 0
    %10 = vsyncpa [#allocation6], 0
    %s11 = scalar_lea.sflag [#allocation6], 1
    %12 = vsyncpa %s11, 0
    %13 = vsyncpa [#allocation4], 0
    %s14 = scalar_lea.sflag [#allocation4], 1
    %15 = vsyncpa %s14, 0
    loop: start=0, step=1, limit=4
    $region2: #{tpu_custom_call.1} parent=1 // loop_pre_header
      _
    $region3: #{tpu_custom_call.1} parent=1 // loop_header
      %s17 = sphi 0, %s21
      %p18 = scmp.ge.s32.totalorder %s17, 4
      %s25 = sphi 0, %s25
      %s27 = sphi 0, %s25
      %s28 = sphi 0, %s27
      %s42 = sphi 0, %s28
      %s48 = sphi 0, %s50
      %s51 = sphi 0, %s48
      %s52 = sphi 0, %s51
      %s68 = sphi 0, %s52
      %s72 = sphi 0, %s72
      %s74 = sphi 0, %s72
      %s75 = sphi 0, %s74
      %s89 = sphi 0, %s75
      %s93 = sphi 0, %s93
      %s95 = sphi 0, %s93
      %s96 = sphi 0, %s95
      %s110 = sphi 0, %s96
      %s116 = sphi 0, %s118
      %s119 = sphi 0, %s116
      %s120 = sphi 0, %s119
      %s136 = sphi 0, %s120
    $region4: #{tpu_custom_call.1} parent=1 // loop_header_branch
      %20 = sbr.rel (%p18) target = $region8
    $region5: #{tpu_custom_call.1} parent=1 // loop_body
      %s22 = ssub.s32 %s17, 1
      %s23 = ssub.s32 %s17, 2
      %s24 = sadd.s32 %s17, 1
      %s26 = sadd.s32 %s25, 1
      %p29 = scmp.eq.s32.totalorder %s17, 1
      %p30 = scmp.ne.s32.totalorder %s25, %s27
      %p31 = scmp.eq.s32.totalorder %s17, 0
      %p32 = por %p30, %p31
      %p33 = scmp.ne.s32.totalorder %s25, %s27
      %p34 = scmp.eq.s32.totalorder %s22, 1
      %p35 = por %p33, %p34
      %p36 = scmp.ne.s32.totalorder %s27, %s28
      %p37 = scmp.eq.s32.totalorder %s22, 0
      %p38 = por %p36, %p37
      %p39 = scmp.ne.s32.totalorder %s27, %s28
      %p40 = scmp.eq.s32.totalorder %s23, 1
      %p41 = por %p39, %p40
      %p43 = scmp.ne.s32.totalorder %s28, %s42
      %p44 = scmp.eq.s32.totalorder %s23, 0
      %p45 = por %p43, %p44
      %s46 = ssub.s32 %s17, %s24
      %p47 = scmp.eq.s32.totalorder %s46, 0
      %s49 = sadd.s32 %s48, 1
      %s50 = scalar_select %p47, %s48, %s49
      %p53 = pneg %p47
      %p54 = scmp.eq.s32.totalorder %s17, 1
      %p55 = por %p53, %p54
      %p56 = scmp.ne.s32.totalorder %s48, %s51
      %p57 = scmp.eq.s32.totalorder %s17, 0
      %p58 = por %p56, %p57
      %p59 = scmp.ne.s32.totalorder %s48, %s51
      %p60 = scmp.eq.s32.totalorder %s22, 1
      %p61 = por %p59, %p60
      %p62 = scmp.ne.s32.totalorder %s51, %s52
      %p63 = scmp.eq.s32.totalorder %s22, 0
      %p64 = por %p62, %p63
      %p65 = scmp.ne.s32.totalorder %s51, %s52
      %p66 = scmp.eq.s32.totalorder %s23, 1
      %p67 = por %p65, %p66
      %p69 = scmp.ne.s32.totalorder %s52, %s68
      %p70 = scmp.eq.s32.totalorder %s23, 0
      %p71 = por %p69, %p70
      %s73 = sadd.s32 %s72, 1
      %p76 = scmp.eq.s32.totalorder %s17, 1
      %p77 = scmp.ne.s32.totalorder %s72, %s74
      %p78 = scmp.eq.s32.totalorder %s17, 0
      %p79 = por %p77, %p78
      %p80 = scmp.ne.s32.totalorder %s72, %s74
      %p81 = scmp.eq.s32.totalorder %s22, 1
      %p82 = por %p80, %p81
      %p83 = scmp.ne.s32.totalorder %s74, %s75
      %p84 = scmp.eq.s32.totalorder %s22, 0
      %p85 = por %p83, %p84
      %p86 = scmp.ne.s32.totalorder %s74, %s75
      %p87 = scmp.eq.s32.totalorder %s23, 1
      %p88 = por %p86, %p87
      %p90 = scmp.ne.s32.totalorder %s75, %s89
      %p91 = scmp.eq.s32.totalorder %s23, 0
      %p92 = por %p90, %p91
      %s94 = sadd.s32 %s93, 1
      %p97 = scmp.eq.s32.totalorder %s17, 1
      %p98 = scmp.ne.s32.totalorder %s93, %s95
      %p99 = scmp.eq.s32.totalorder %s17, 0
      %p100 = por %p98, %p99
      %p101 = scmp.ne.s32.totalorder %s93, %s95
      %p102 = scmp.eq.s32.totalorder %s22, 1
      %p103 = por %p101, %p102
      %p104 = scmp.ne.s32.totalorder %s95, %s96
      %p105 = scmp.eq.s32.totalorder %s22, 0
      %p106 = por %p104, %p105
      %p107 = scmp.ne.s32.totalorder %s95, %s96
      %p108 = scmp.eq.s32.totalorder %s23, 1
      %p109 = por %p107, %p108
      %p111 = scmp.ne.s32.totalorder %s96, %s110
      %p112 = scmp.eq.s32.totalorder %s23, 0
      %p113 = por %p111, %p112
      %s114 = ssub.s32 %s17, %s24
      %p115 = scmp.eq.s32.totalorder %s114, 0
      %s117 = sadd.s32 %s116, 1
      %s118 = scalar_select %p115, %s116, %s117
      %p121 = pneg %p115
      %p122 = scmp.eq.s32.totalorder %s17, 1
      %p123 = por %p121, %p122
      %p124 = scmp.ne.s32.totalorder %s116, %s119
      %p125 = scmp.eq.s32.totalorder %s17, 0
      %p126 = por %p124, %p125
      %p127 = scmp.ne.s32.totalorder %s116, %s119
      %p128 = scmp.eq.s32.totalorder %s22, 1
      %p129 = por %p127, %p128
      %p130 = scmp.ne.s32.totalorder %s119, %s120
      %p131 = scmp.eq.s32.totalorder %s22, 0
      %p132 = por %p130, %p131
      %p133 = scmp.ne.s32.totalorder %s119, %s120
      %p134 = scmp.eq.s32.totalorder %s23, 1
      %p135 = por %p133, %p134
      %p137 = scmp.ne.s32.totalorder %s120, %s136
      %p138 = scmp.eq.s32.totalorder %s23, 0
      %p139 = por %p137, %p138
      %p140 = scmp.le.s32.totalorder 1, %s17
      %p141 = scmp.lt.s32.totalorder %s17, 3
      %p142 = pnand %p140, %p141
      %p143 = pneg %p142
      // Predicated region
      $region9: #{tpu_custom_call.1} parent=5 // pred_check
        _
      $region10: #{tpu_custom_call.1} parent=5 // pred_check_branch
        %145 = sbr.rel (%p142) target = $region12
      $region11: #{tpu_custom_call.1} parent=5 // pred_region
        %s146 = ssub.s32 %s17, 1
        // Predicated region
        $region13: #{tpu_custom_call.1} parent=11 // pred_check
          %p147 = pneg %p38
        $region14: #{tpu_custom_call.1} parent=11 // pred_check_branch
          %149 = sbr.rel (%p147) target = $region16
        $region15: #{tpu_custom_call.1} parent=11 // pred_region
          %151 = vsyncadd [#allocation3], 0
          %s152 = sshll.u32 %s0, 4
          %s153 = int_to_ptr.hbm [resolvable:$true] %s152
          %s154 = sshll.u32 [#allocation2], 4
          %s155 = int_to_ptr.vmem [resolvable:$true] %s154
          %160 = dma.hbm_to_vmem [thread:$0]  %s153, 1024, %s155, [#allocation3], 64, 64, 4
        $region16: #{tpu_custom_call.1} parent=11 // pred_fallthru
          _
        // Predicated region
        $region17: #{tpu_custom_call.1} parent=11 // pred_check
          %p161 = pneg %p85
        $region18: #{tpu_custom_call.1} parent=11 // pred_check_branch
          %163 = sbr.rel (%p161) target = $region20
        $region19: #{tpu_custom_call.1} parent=11 // pred_region
          %165 = vsyncadd [#allocation6], 0
          %s166 = sshll.u32 %s2, 4
          %s167 = int_to_ptr.hbm [resolvable:$true] %s166
          %s168 = sshll.u32 [#allocation7], 4
          %s169 = int_to_ptr.vmem [resolvable:$true] %s168
          %174 = dma.hbm_to_vmem [thread:$0]  %s167, 2048, %s169, [#allocation6], 128, 128, 8
        $region20: #{tpu_custom_call.1} parent=11 // pred_fallthru
          _
        // Predicated region
        $region21: #{tpu_custom_call.1} parent=11 // pred_check
          %p175 = pneg %p106
        $region22: #{tpu_custom_call.1} parent=11 // pred_check_branch
          %177 = sbr.rel (%p175) target = $region24
        $region23: #{tpu_custom_call.1} parent=11 // pred_region
          _
        $region24: #{tpu_custom_call.1} parent=11 // pred_fallthru
          _
      $region12: #{tpu_custom_call.1} parent=5 // pred_fallthru
        _
      %p178 = scmp.lt.s32.totalorder %s17, 2
      // Predicated region
      $region25: #{tpu_custom_call.1} parent=5 // pred_check
        %p179 = pneg %p178
      $region26: #{tpu_custom_call.1} parent=5 // pred_check_branch
        %181 = sbr.rel (%p179) target = $region28
      $region27: #{tpu_custom_call.1} parent=5 // pred_region
        // Predicated region
        $region29: #{tpu_custom_call.1} parent=27 // pred_check
          %p182 = pneg %p58
        $region30: #{tpu_custom_call.1} parent=27 // pred_check_branch
          %184 = sbr.rel (%p182) target = $region32
        $region31: #{tpu_custom_call.1} parent=27 // pred_region
          %s185 = sand.u32 %s17, 1
          %s186 = scalar_lea.sflag [#allocation6], %s185
          %s187 = sand.u32 %s48, 1
          %s188 = smul.addr %s187, 64
          %s189 = scalar_lea.vmem [#allocation5], %s188
          %191 = vsyncadd %s186, 0
          %s192 = smul.addr %s17, 16
          %s193 = smul.addr %s192, 4
          %s194 = scalar_lea.hbm %s1, %s193
          %s195 = sshll.u32 %s194, 4
          %s196 = int_to_ptr.hbm [resolvable:$true] %s195
          %s197 = sshll.u32 %s189, 4
          %s198 = int_to_ptr.vmem [resolvable:$true] %s197
          %203 = dma.hbm_to_vmem [thread:$0]  %s196, 1024, %s198, %s186, 64, 64, 4
        $region32: #{tpu_custom_call.1} parent=27 // pred_fallthru
          _
      $region28: #{tpu_custom_call.1} parent=5 // pred_fallthru
        _
      %p204 = scmp.le.s32.totalorder 1, %s17
      %p205 = scmp.lt.s32.totalorder %s17, 3
      %p206 = pnand %p204, %p205
      %p207 = pneg %p206
      // Predicated region
      $region33: #{tpu_custom_call.1} parent=5 // pred_check
        _
      $region34: #{tpu_custom_call.1} parent=5 // pred_check_branch
        %209 = sbr.rel (%p206) target = $region36
      $region35: #{tpu_custom_call.1} parent=5 // pred_region
        %s210 = ssub.s32 %s17, 1
        // Predicated region
        $region37: #{tpu_custom_call.1} parent=35 // pred_check
          %p211 = pneg %p38
        $region38: #{tpu_custom_call.1} parent=35 // pred_check_branch
          %213 = sbr.rel (%p211) target = $region40
        $region39: #{tpu_custom_call.1} parent=35 // pred_region
          %215 = dma.done [#allocation3], 1024
        $region40: #{tpu_custom_call.1} parent=35 // pred_fallthru
          _
        %s216 = sand.u32 %s22, 1
        %s217 = scalar_lea.sflag [#allocation6], %s216
        %s218 = sand.u32 %s51, 1
        %s219 = smul.addr %s218, 64
        %s220 = scalar_lea.vmem [#allocation5], %s219
        // Predicated region
        $region41: #{tpu_custom_call.1} parent=35 // pred_check
          %p221 = pneg %p64
        $region42: #{tpu_custom_call.1} parent=35 // pred_check_branch
          %223 = sbr.rel (%p221) target = $region44
        $region43: #{tpu_custom_call.1} parent=35 // pred_region
          %225 = dma.done %s217, 1024
        $region44: #{tpu_custom_call.1} parent=35 // pred_fallthru
          _
        // Predicated region
        $region45: #{tpu_custom_call.1} parent=35 // pred_check
          %p226 = pneg %p85
        $region46: #{tpu_custom_call.1} parent=35 // pred_check_branch
          %228 = sbr.rel (%p226) target = $region48
        $region47: #{tpu_custom_call.1} parent=35 // pred_region
          %230 = dma.done [#allocation6], 2048
        $region48: #{tpu_custom_call.1} parent=35 // pred_fallthru
          _
        %p231 = pneg %p38
        %p232 = pneg %p35
        %s233 = sand.u32 %s22, 1
        %s234 = scalar_lea.sflag [#allocation6], %s233
        %s235 = sand.u32 %s51, 1
        %s236 = smul.addr %s235, 64
        %s237 = scalar_lea.vmem [#allocation5], %s236
        %p238 = pneg %p64
        %p239 = pneg %p61
        %p240 = pneg %p85
        %p241 = pneg %p82
        %p242 = pneg %p106
        %p243 = pneg %p103
        %p244 = pneg %p132
        %p245 = pneg %p129
        %s246 = sand.u32 %s119, 1
        %s247 = scalar_lea.sflag [#allocation4], %s246
        %s248 = sand.u32 %s119, 1
        %s249 = smul.addr %s248, 128
        %s250 = scalar_lea.vmem [#allocation8], %s249
        %v251 = vld [vmem:[#allocation2] sm:$0xf]
        %v252 = vld [vmem:[#allocation2 + $0x4] sm:$0xf]
        %v253 = vld [vmem:[#allocation2 + $0x8] sm:$0xf]
        %v254 = vld [vmem:[#allocation2 + $0xc] sm:$0xf]
        %v255 = vld [vmem:[#allocation2 + $0x10] sm:$0xf]
        %v256 = vld [vmem:[#allocation2 + $0x14] sm:$0xf]
        %v257 = vld [vmem:[#allocation2 + $0x18] sm:$0xf]
        %v258 = vld [vmem:[#allocation2 + $0x1c] sm:$0xf]
        %v259 = vld [vmem:[#allocation2 + $0x20] sm:$0xf]
        %v260 = vld [vmem:[#allocation2 + $0x24] sm:$0xf]
        %v261 = vld [vmem:[#allocation2 + $0x28] sm:$0xf]
        %v262 = vld [vmem:[#allocation2 + $0x2c] sm:$0xf]
        %v263 = vld [vmem:[#allocation2 + $0x30] sm:$0xf]
        %v264 = vld [vmem:[#allocation2 + $0x34] sm:$0xf]
        %v265 = vld [vmem:[#allocation2 + $0x38] sm:$0xf]
        %v266 = vld [vmem:[#allocation2 + $0x3c] sm:$0xf]
        %v267 = vunpack.c.l.bf16 %v251
        %v268 = vunpack.c.l.bf16 %v252
        %v269 = vunpack.c.l.bf16 %v253
        %v270 = vunpack.c.l.bf16 %v254
        %v271 = vunpack.c.l.bf16 %v255
        %v272 = vunpack.c.l.bf16 %v256
        %v273 = vunpack.c.l.bf16 %v257
        %v274 = vunpack.c.l.bf16 %v258
        %v275 = vunpack.c.l.bf16 %v259
        %v276 = vunpack.c.l.bf16 %v260
        %v277 = vunpack.c.l.bf16 %v261
        %v278 = vunpack.c.l.bf16 %v262
        %v279 = vunpack.c.l.bf16 %v263
        %v280 = vunpack.c.l.bf16 %v264
        %v281 = vunpack.c.l.bf16 %v265
        %v282 = vunpack.c.l.bf16 %v266
        %v283 = vld [vmem:[%s220] sm:$0xf]
        %v284 = vld [vmem:[%s220 + $0x4] sm:$0xf]
        %v285 = vld [vmem:[%s220 + $0x8] sm:$0xf]
        %v286 = vld [vmem:[%s220 + $0xc] sm:$0xf]
        %v287 = vld [vmem:[%s220 + $0x10] sm:$0xf]
        %v288 = vld [vmem:[%s220 + $0x14] sm:$0xf]
        %v289 = vld [vmem:[%s220 + $0x18] sm:$0xf]
        %v290 = vld [vmem:[%s220 + $0x1c] sm:$0xf]
        %v291 = vld [vmem:[%s220 + $0x20] sm:$0xf]
        %v292 = vld [vmem:[%s220 + $0x24] sm:$0xf]
        %v293 = vld [vmem:[%s220 + $0x28] sm:$0xf]
        %v294 = vld [vmem:[%s220 + $0x2c] sm:$0xf]
        %v295 = vld [vmem:[%s220 + $0x30] sm:$0xf]
        %v296 = vld [vmem:[%s220 + $0x34] sm:$0xf]
        %v297 = vld [vmem:[%s220 + $0x38] sm:$0xf]
        %v298 = vld [vmem:[%s220 + $0x3c] sm:$0xf]
        %v299 = vld [vmem:[#allocation7] sm:$0xf]
        %v300 = vld [vmem:[#allocation7 + $0x8] sm:$0xf]
        %v301 = vld [vmem:[#allocation7 + $0x10] sm:$0xf]
        %v302 = vld [vmem:[#allocation7 + $0x18] sm:$0xf]
        %v303 = vld [vmem:[#allocation7 + $0x20] sm:$0xf]
        %v304 = vld [vmem:[#allocation7 + $0x28] sm:$0xf]
        %v305 = vld [vmem:[#allocation7 + $0x30] sm:$0xf]
        %v306 = vld [vmem:[#allocation7 + $0x38] sm:$0xf]
        %v307 = vld [vmem:[#allocation7 + $0x40] sm:$0xf]
        %v308 = vld [vmem:[#allocation7 + $0x48] sm:$0xf]
        %v309 = vld [vmem:[#allocation7 + $0x50] sm:$0xf]
        %v310 = vld [vmem:[#allocation7 + $0x58] sm:$0xf]
        %v311 = vld [vmem:[#allocation7 + $0x60] sm:$0xf]
        %v312 = vld [vmem:[#allocation7 + $0x68] sm:$0xf]
        %v313 = vld [vmem:[#allocation7 + $0x70] sm:$0xf]
        %v314 = vld [vmem:[#allocation7 + $0x78] sm:$0xf]
        %v331 = vunpack.c.l.b16 %v283
        %v332 = vunpack.c.l.b16 %v284
        %v333 = vunpack.c.l.b16 %v285
        %v334 = vunpack.c.l.b16 %v286
        %v335 = vunpack.c.l.b16 %v287
        %v336 = vunpack.c.l.b16 %v288
        %v337 = vunpack.c.l.b16 %v289
        %v338 = vunpack.c.l.b16 %v290
        %v339 = vunpack.c.l.b16 %v291
        %v340 = vunpack.c.l.b16 %v292
        %v341 = vunpack.c.l.b16 %v293
        %v342 = vunpack.c.l.b16 %v294
        %v343 = vunpack.c.l.b16 %v295
        %v344 = vunpack.c.l.b16 %v296
        %v345 = vunpack.c.l.b16 %v297
        %v346 = vunpack.c.l.b16 %v298
        %v347 = vpack.c.b16 %v332, %v331
        %v348 = vpack.c.b16 %v334, %v333
        %v349 = vpack.c.b16 %v336, %v335
        %v350 = vpack.c.b16 %v338, %v337
        %v351 = vpack.c.b16 %v340, %v339
        %v352 = vpack.c.b16 %v342, %v341
        %v353 = vpack.c.b16 %v344, %v343
        %v354 = vpack.c.b16 %v346, %v345
        %v379 = vunpack.c.l.b16 %v299
        %v380 = vunpack.c.l.b16 %v300
        %v381 = vunpack.c.l.b16 %v301
        %v382 = vunpack.c.l.b16 %v302
        %v383 = vunpack.c.l.b16 %v303
        %v384 = vunpack.c.l.b16 %v304
        %v385 = vunpack.c.l.b16 %v305
        %v386 = vunpack.c.l.b16 %v306
        %v387 = vunpack.c.l.b16 %v307
        %v388 = vunpack.c.l.b16 %v308
        %v389 = vunpack.c.l.b16 %v309
        %v390 = vunpack.c.l.b16 %v310
        %v391 = vunpack.c.l.b16 %v311
        %v392 = vunpack.c.l.b16 %v312
        %v393 = vunpack.c.l.b16 %v313
        %v394 = vunpack.c.l.b16 %v314
        %v395 = vpack.c.b16 %v380, %v379
        %v396 = vpack.c.b16 %v382, %v381
        %v397 = vpack.c.b16 %v384, %v383
        %v398 = vpack.c.b16 %v386, %v385
        %v399 = vpack.c.b16 %v388, %v387
        %v400 = vpack.c.b16 %v390, %v389
        %v401 = vpack.c.b16 %v392, %v391
        %v402 = vpack.c.b16 %v394, %v393
        %411 = vmatpush.bf16.msra.mxu0 %v402
        %412 = vmatpush.bf16.msra.mxu0 %v401
        %413 = vmatpush.bf16.msra.mxu0 %v400
        %414 = vmatpush.bf16.msra.mxu0 %v399
        %415 = vmatpush.bf16.msra.mxu0 %v398
        %416 = vmatpush.bf16.msra.mxu0 %v397
        %417 = vmatpush.bf16.msra.mxu0 %v396
        %418 = vmatpush.bf16.msra.mxu0 %v395
        %419 = vmatmul.bf16.gmra.mxu0 %v347
        %v420 = vpop.f32.mrf.mxu0
        %v421 = vadd.f32 0.0, %v420
        %v422 = vpop.f32.mrf.mxu0
        %v423 = vadd.f32 0.0, %v422
        %424 = vmatmul.bf16.gmra.mxu0 %v348
        %v425 = vpop.f32.mrf.mxu0
        %v426 = vadd.f32 0.0, %v425
        %v427 = vpop.f32.mrf.mxu0
        %v428 = vadd.f32 0.0, %v427
        %429 = vmatmul.bf16.gmra.mxu0 %v349
        %v430 = vpop.f32.mrf.mxu0
        %v431 = vadd.f32 0.0, %v430
        %v432 = vpop.f32.mrf.mxu0
        %v433 = vadd.f32 0.0, %v432
        %434 = vmatmul.bf16.gmra.mxu0 %v350
        %v435 = vpop.f32.mrf.mxu0
        %v436 = vadd.f32 0.0, %v435
        %v437 = vpop.f32.mrf.mxu0
        %v438 = vadd.f32 0.0, %v437
        %439 = vmatmul.bf16.gmra.mxu0 %v351
        %v440 = vpop.f32.mrf.mxu0
        %v441 = vadd.f32 0.0, %v440
        %v442 = vpop.f32.mrf.mxu0
        %v443 = vadd.f32 0.0, %v442
        %444 = vmatmul.bf16.gmra.mxu0 %v352
        %v445 = vpop.f32.mrf.mxu0
        %v446 = vadd.f32 0.0, %v445
        %v447 = vpop.f32.mrf.mxu0
        %v448 = vadd.f32 0.0, %v447
        %449 = vmatmul.bf16.gmra.mxu0 %v353
        %v450 = vpop.f32.mrf.mxu0
        %v451 = vadd.f32 0.0, %v450
        %v452 = vpop.f32.mrf.mxu0
        %v453 = vadd.f32 0.0, %v452
        %454 = vmatmul.bf16.gmra.mxu0 %v354
        %v455 = vpop.f32.mrf.mxu0
        %v456 = vadd.f32 0.0, %v455
        %v457 = vpop.f32.mrf.mxu0
        %v458 = vadd.f32 0.0, %v457
        %459 = vdwg.mxu0
        %v460 = vld [vmem:[%s3] sm:$0x1]
        %v461 = vperm.slane %v460, 0
        %462 = vmatpush.msra.mxu0 %v458
        %463 = vmatpush.msra.mxu0 %v456
        %464 = vmatpush.msra.mxu0 %v453
        %465 = vmatpush.msra.mxu0 %v451
        %466 = vmatpush.msra.mxu0 %v448
        %467 = vmatpush.msra.mxu0 %v446
        %468 = vmatpush.msra.mxu0 %v443
        %469 = vmatpush.msra.mxu0 %v441
        %470 = vmatpush.msra.mxu0 %v438
        %471 = vmatpush.msra.mxu0 %v436
        %472 = vmatpush.msra.mxu0 %v433
        %473 = vmatpush.msra.mxu0 %v431
        %474 = vmatpush.msra.mxu0 %v428
        %475 = vmatpush.msra.mxu0 %v426
        %476 = vmatpush.msra.mxu0 %v423
        %477 = vmatpush.msra.mxu0 %v421
        %478 = vmatmul.f32.gmra.mxu0 %v267
        %v479 = vpop.f32.mrf.mxu0
        %v480 = vadd.f32 %v461, %v479
        %481 = vmatmul.f32.gmra.mxu0 %v268
        %v482 = vpop.f32.mrf.mxu0
        %v483 = vadd.f32 %v461, %v482
        %484 = vmatmul.f32.gmra.mxu0 %v269
        %v485 = vpop.f32.mrf.mxu0
        %v486 = vadd.f32 %v461, %v485
        %487 = vmatmul.f32.gmra.mxu0 %v270
        %v488 = vpop.f32.mrf.mxu0
        %v489 = vadd.f32 %v461, %v488
        %490 = vmatmul.f32.gmra.mxu0 %v271
        %v491 = vpop.f32.mrf.mxu0
        %v492 = vadd.f32 %v461, %v491
        %493 = vmatmul.f32.gmra.mxu0 %v272
        %v494 = vpop.f32.mrf.mxu0
        %v495 = vadd.f32 %v461, %v494
        %496 = vmatmul.f32.gmra.mxu0 %v273
        %v497 = vpop.f32.mrf.mxu0
        %v498 = vadd.f32 %v461, %v497
        %499 = vmatmul.f32.gmra.mxu0 %v274
        %v500 = vpop.f32.mrf.mxu0
        %v501 = vadd.f32 %v461, %v500
        %502 = vmatmul.f32.gmra.mxu0 %v275
        %v503 = vpop.f32.mrf.mxu0
        %v504 = vadd.f32 %v461, %v503
        %505 = vmatmul.f32.gmra.mxu0 %v276
        %v506 = vpop.f32.mrf.mxu0
        %v507 = vadd.f32 %v461, %v506
        %508 = vmatmul.f32.gmra.mxu0 %v277
        %v509 = vpop.f32.mrf.mxu0
        %v510 = vadd.f32 %v461, %v509
        %511 = vmatmul.f32.gmra.mxu0 %v278
        %v512 = vpop.f32.mrf.mxu0
        %v513 = vadd.f32 %v461, %v512
        %514 = vmatmul.f32.gmra.mxu0 %v279
        %v515 = vpop.f32.mrf.mxu0
        %v516 = vadd.f32 %v461, %v515
        %517 = vmatmul.f32.gmra.mxu0 %v280
        %v518 = vpop.f32.mrf.mxu0
        %v519 = vadd.f32 %v461, %v518
        %520 = vmatmul.f32.gmra.mxu0 %v281
        %v521 = vpop.f32.mrf.mxu0
        %v522 = vadd.f32 %v461, %v521
        %523 = vmatmul.f32.gmra.mxu0 %v282
        %v524 = vpop.f32.mrf.mxu0
        %v525 = vadd.f32 %v461, %v524
        %526 = vdwg.mxu0
        %v527 = vmax.f32 %v480, 0.0
        %v528 = vmax.f32 %v483, 0.0
        %v529 = vmax.f32 %v486, 0.0
        %v530 = vmax.f32 %v489, 0.0
        %v531 = vmax.f32 %v492, 0.0
        %v532 = vmax.f32 %v495, 0.0
        %v533 = vmax.f32 %v498, 0.0
        %v534 = vmax.f32 %v501, 0.0
        %v535 = vmax.f32 %v504, 0.0
        %v536 = vmax.f32 %v507, 0.0
        %v537 = vmax.f32 %v510, 0.0
        %v538 = vmax.f32 %v513, 0.0
        %v539 = vmax.f32 %v516, 0.0
        %v540 = vmax.f32 %v519, 0.0
        %v541 = vmax.f32 %v522, 0.0
        %v542 = vmax.f32 %v525, 0.0
        %v543 = vpack.c.bf16 %v528, %v527
        %v544 = vpack.c.bf16 %v530, %v529
        %v545 = vpack.c.bf16 %v532, %v531
        %v546 = vpack.c.bf16 %v534, %v533
        %v547 = vpack.c.bf16 %v536, %v535
        %v548 = vpack.c.bf16 %v538, %v537
        %v549 = vpack.c.bf16 %v540, %v539
        %v550 = vpack.c.bf16 %v542, %v541
        %v551 = vld [vmem:[#allocation7 + $0x4] sm:$0xf]
        %v552 = vld [vmem:[#allocation7 + $0xc] sm:$0xf]
        %v553 = vld [vmem:[#allocation7 + $0x14] sm:$0xf]
        %v554 = vld [vmem:[#allocation7 + $0x1c] sm:$0xf]
        %v555 = vld [vmem:[#allocation7 + $0x24] sm:$0xf]
        %v556 = vld [vmem:[#allocation7 + $0x2c] sm:$0xf]
        %v557 = vld [vmem:[#allocation7 + $0x34] sm:$0xf]
        %v558 = vld [vmem:[#allocation7 + $0x3c] sm:$0xf]
        %v559 = vld [vmem:[#allocation7 + $0x44] sm:$0xf]
        %v560 = vld [vmem:[#allocation7 + $0x4c] sm:$0xf]
        %v561 = vld [vmem:[#allocation7 + $0x54] sm:$0xf]
        %v562 = vld [vmem:[#allocation7 + $0x5c] sm:$0xf]
        %v563 = vld [vmem:[#allocation7 + $0x64] sm:$0xf]
        %v564 = vld [vmem:[#allocation7 + $0x6c] sm:$0xf]
        %v565 = vld [vmem:[#allocation7 + $0x74] sm:$0xf]
        %v566 = vld [vmem:[#allocation7 + $0x7c] sm:$0xf]
        %v583 = vunpack.c.l.b16 %v551
        %v584 = vunpack.c.l.b16 %v552
        %v585 = vunpack.c.l.b16 %v553
        %v586 = vunpack.c.l.b16 %v554
        %v587 = vunpack.c.l.b16 %v555
        %v588 = vunpack.c.l.b16 %v556
        %v589 = vunpack.c.l.b16 %v557
        %v590 = vunpack.c.l.b16 %v558
        %v591 = vunpack.c.l.b16 %v559
        %v592 = vunpack.c.l.b16 %v560
        %v593 = vunpack.c.l.b16 %v561
        %v594 = vunpack.c.l.b16 %v562
        %v595 = vunpack.c.l.b16 %v563
        %v596 = vunpack.c.l.b16 %v564
        %v597 = vunpack.c.l.b16 %v565
        %v598 = vunpack.c.l.b16 %v566
        %v599 = vpack.c.b16 %v584, %v583
        %v600 = vpack.c.b16 %v586, %v585
        %v601 = vpack.c.b16 %v588, %v587
        %v602 = vpack.c.b16 %v590, %v589
        %v603 = vpack.c.b16 %v592, %v591
        %v604 = vpack.c.b16 %v594, %v593
        %v605 = vpack.c.b16 %v596, %v595
        %v606 = vpack.c.b16 %v598, %v597
        %615 = vmatpush.bf16.msra.mxu0 %v606
        %616 = vmatpush.bf16.msra.mxu0 %v605
        %617 = vmatpush.bf16.msra.mxu0 %v604
        %618 = vmatpush.bf16.msra.mxu0 %v603
        %619 = vmatpush.bf16.msra.mxu0 %v602
        %620 = vmatpush.bf16.msra.mxu0 %v601
        %621 = vmatpush.bf16.msra.mxu0 %v600
        %622 = vmatpush.bf16.msra.mxu0 %v599
        %623 = vmatmul.bf16.gmra.mxu0 %v543
        %v624 = vpop.f32.mrf.mxu0
        %v625 = vadd.f32 0.0, %v624
        %v626 = vpop.f32.mrf.mxu0
        %v627 = vadd.f32 0.0, %v626
        %628 = vmatmul.bf16.gmra.mxu0 %v544
        %v629 = vpop.f32.mrf.mxu0
        %v630 = vadd.f32 0.0, %v629
        %v631 = vpop.f32.mrf.mxu0
        %v632 = vadd.f32 0.0, %v631
        %633 = vmatmul.bf16.gmra.mxu0 %v545
        %v634 = vpop.f32.mrf.mxu0
        %v635 = vadd.f32 0.0, %v634
        %v636 = vpop.f32.mrf.mxu0
        %v637 = vadd.f32 0.0, %v636
        %638 = vmatmul.bf16.gmra.mxu0 %v546
        %v639 = vpop.f32.mrf.mxu0
        %v640 = vadd.f32 0.0, %v639
        %v641 = vpop.f32.mrf.mxu0
        %v642 = vadd.f32 0.0, %v641
        %643 = vmatmul.bf16.gmra.mxu0 %v547
        %v644 = vpop.f32.mrf.mxu0
        %v645 = vadd.f32 0.0, %v644
        %v646 = vpop.f32.mrf.mxu0
        %v647 = vadd.f32 0.0, %v646
        %648 = vmatmul.bf16.gmra.mxu0 %v548
        %v649 = vpop.f32.mrf.mxu0
        %v650 = vadd.f32 0.0, %v649
        %v651 = vpop.f32.mrf.mxu0
        %v652 = vadd.f32 0.0, %v651
        %653 = vmatmul.bf16.gmra.mxu0 %v549
        %v654 = vpop.f32.mrf.mxu0
        %v655 = vadd.f32 0.0, %v654
        %v656 = vpop.f32.mrf.mxu0
        %v657 = vadd.f32 0.0, %v656
        %658 = vmatmul.bf16.gmra.mxu0 %v550
        %v659 = vpop.f32.mrf.mxu0
        %v660 = vadd.f32 0.0, %v659
        %v661 = vpop.f32.mrf.mxu0
        %v662 = vadd.f32 0.0, %v661
        %663 = vdwg.mxu0
        %v664 = vld [vmem:[%s3 + $0x1] sm:$0x1]
        %v665 = vperm.slane %v664, 0
        %666 = vmatpush.msra.mxu0 %v662
        %667 = vmatpush.msra.mxu0 %v660
        %668 = vmatpush.msra.mxu0 %v657
        %669 = vmatpush.msra.mxu0 %v655
        %670 = vmatpush.msra.mxu0 %v652
        %671 = vmatpush.msra.mxu0 %v650
        %672 = vmatpush.msra.mxu0 %v647
        %673 = vmatpush.msra.mxu0 %v645
        %674 = vmatpush.msra.mxu0 %v642
        %675 = vmatpush.msra.mxu0 %v640
        %676 = vmatpush.msra.mxu0 %v637
        %677 = vmatpush.msra.mxu0 %v635
        %678 = vmatpush.msra.mxu0 %v632
        %679 = vmatpush.msra.mxu0 %v630
        %680 = vmatpush.msra.mxu0 %v627
        %681 = vmatpush.msra.mxu0 %v625
        %682 = vmatmul.f32.gmra.mxu0 %v267
        %v683 = vpop.f32.mrf.mxu0
        %v684 = vadd.f32 %v665, %v683
        %685 = vmatmul.f32.gmra.mxu0 %v268
        %v686 = vpop.f32.mrf.mxu0
        %v687 = vadd.f32 %v665, %v686
        %688 = vmatmul.f32.gmra.mxu0 %v269
        %v689 = vpop.f32.mrf.mxu0
        %v690 = vadd.f32 %v665, %v689
        %691 = vmatmul.f32.gmra.mxu0 %v270
        %v692 = vpop.f32.mrf.mxu0
        %v693 = vadd.f32 %v665, %v692
        %694 = vmatmul.f32.gmra.mxu0 %v271
        %v695 = vpop.f32.mrf.mxu0
        %v696 = vadd.f32 %v665, %v695
        %697 = vmatmul.f32.gmra.mxu0 %v272
        %v698 = vpop.f32.mrf.mxu0
        %v699 = vadd.f32 %v665, %v698
        %700 = vmatmul.f32.gmra.mxu0 %v273
        %v701 = vpop.f32.mrf.mxu0
        %v702 = vadd.f32 %v665, %v701
        %703 = vmatmul.f32.gmra.mxu0 %v274
        %v704 = vpop.f32.mrf.mxu0
        %v705 = vadd.f32 %v665, %v704
        %706 = vmatmul.f32.gmra.mxu0 %v275
        %v707 = vpop.f32.mrf.mxu0
        %v708 = vadd.f32 %v665, %v707
        %709 = vmatmul.f32.gmra.mxu0 %v276
        %v710 = vpop.f32.mrf.mxu0
        %v711 = vadd.f32 %v665, %v710
        %712 = vmatmul.f32.gmra.mxu0 %v277
        %v713 = vpop.f32.mrf.mxu0
        %v714 = vadd.f32 %v665, %v713
        %715 = vmatmul.f32.gmra.mxu0 %v278
        %v716 = vpop.f32.mrf.mxu0
        %v717 = vadd.f32 %v665, %v716
        %718 = vmatmul.f32.gmra.mxu0 %v279
        %v719 = vpop.f32.mrf.mxu0
        %v720 = vadd.f32 %v665, %v719
        %721 = vmatmul.f32.gmra.mxu0 %v280
        %v722 = vpop.f32.mrf.mxu0
        %v723 = vadd.f32 %v665, %v722
        %724 = vmatmul.f32.gmra.mxu0 %v281
        %v725 = vpop.f32.mrf.mxu0
        %v726 = vadd.f32 %v665, %v725
        %727 = vmatmul.f32.gmra.mxu0 %v282
        %v728 = vpop.f32.mrf.mxu0
        %v729 = vadd.f32 %v665, %v728
        %730 = vdwg.mxu0
        %731 = vst [vmem:[%s250] sm:$0xff] %v684
        %732 = vst [vmem:[%s250 + $0x8] sm:$0xff] %v687
        %733 = vst [vmem:[%s250 + $0x10] sm:$0xff] %v690
        %734 = vst [vmem:[%s250 + $0x18] sm:$0xff] %v693
        %735 = vst [vmem:[%s250 + $0x20] sm:$0xff] %v696
        %736 = vst [vmem:[%s250 + $0x28] sm:$0xff] %v699
        %737 = vst [vmem:[%s250 + $0x30] sm:$0xff] %v702
        %738 = vst [vmem:[%s250 + $0x38] sm:$0xff] %v705
        %739 = vst [vmem:[%s250 + $0x40] sm:$0xff] %v708
        %740 = vst [vmem:[%s250 + $0x48] sm:$0xff] %v711
        %741 = vst [vmem:[%s250 + $0x50] sm:$0xff] %v714
        %742 = vst [vmem:[%s250 + $0x58] sm:$0xff] %v717
        %743 = vst [vmem:[%s250 + $0x60] sm:$0xff] %v720
        %744 = vst [vmem:[%s250 + $0x68] sm:$0xff] %v723
        %745 = vst [vmem:[%s250 + $0x70] sm:$0xff] %v726
        %746 = vst [vmem:[%s250 + $0x78] sm:$0xff] %v729
        %s747 = sand.u32 %s119, 1
        %s748 = scalar_lea.sflag [#allocation4], %s747
        %s749 = sand.u32 %s119, 1
        %s750 = smul.addr %s749, 128
        %s751 = scalar_lea.vmem [#allocation8], %s750
        // Predicated region
        $region49: #{tpu_custom_call.1} parent=35 // pred_check
          %p752 = pneg %p129
        $region50: #{tpu_custom_call.1} parent=35 // pred_check_branch
          %754 = sbr.rel (%p752) target = $region52
        $region51: #{tpu_custom_call.1} parent=35 // pred_region
          %756 = vsyncadd %s748, 0
          %s757 = smul.addr %s22, 16
          %s758 = smul.addr %s757, 8
          %s759 = scalar_lea.hbm %s4, %s758
          %s760 = sshll.u32 %s751, 4
          %s761 = int_to_ptr.vmem [resolvable:$true] %s760
          %s762 = sshll.u32 %s759, 4
          %s763 = int_to_ptr.hbm [resolvable:$true] %s762
          %768 = dma.vmem_to_hbm [thread:$0]  %s761, 2048, %s763, %s748, 128, 128, 8
        $region52: #{tpu_custom_call.1} parent=35 // pred_fallthru
          _
      $region36: #{tpu_custom_call.1} parent=5 // pred_fallthru
        _
      %p769 = scmp.le.s32.totalorder 2, %s17
      // Predicated region
      $region53: #{tpu_custom_call.1} parent=5 // pred_check
        %p770 = pneg %p769
      $region54: #{tpu_custom_call.1} parent=5 // pred_check_branch
        %772 = sbr.rel (%p770) target = $region56
      $region55: #{tpu_custom_call.1} parent=5 // pred_region
        %s773 = ssub.s32 %s17, 2
        // Predicated region
        $region57: #{tpu_custom_call.1} parent=55 // pred_check
          %p774 = pneg %p135
        $region58: #{tpu_custom_call.1} parent=55 // pred_check_branch
          %776 = sbr.rel (%p774) target = $region60
        $region59: #{tpu_custom_call.1} parent=55 // pred_region
          %s777 = sand.u32 %s120, 1
          %s778 = scalar_lea.sflag [#allocation4], %s777
          %s779 = sand.u32 %s120, 1
          %s780 = smul.addr %s779, 128
          %s781 = scalar_lea.vmem [#allocation8], %s780
          %783 = dma.done %s778, 2048
        $region60: #{tpu_custom_call.1} parent=55 // pred_fallthru
          _
      $region56: #{tpu_custom_call.1} parent=5 // pred_fallthru
        _
    $region6: #{tpu_custom_call.1} parent=1 // loop_footer
      %s21 = sadd.s32 1, %s17
    $region7: #{tpu_custom_call.1} parent=1 // loop_footer_branch
      %16 = sbr.rel target = $region3
    $region8: #{tpu_custom_call.1} parent=1 // loop_exit
      _
    %784 = vsyncpa [#allocation3], 1
    %s785 = scalar_lea.sflag [#allocation3], 1
    %786 = vsyncpa %s785, 1
    %787 = vsyncpa [#allocation6], 1
    %s788 = scalar_lea.sflag [#allocation6], 1
    %789 = vsyncpa %s788, 1
    %790 = vsyncpa [#allocation4], 1
    %s791 = scalar_lea.sflag [#allocation4], 1
    %792 = vsyncpa %s791, 1

</llo_original>
